<compile_context>
chip_gen: v7x
topology: tpu7x:2x2x1
jax: 0.10.0
libtpu: 0.0.40
codegen_flags: <defaults>
</compile_context>

<pallas_src>
from functools import partial

import jax
import jax.numpy as jnp
from jax.experimental import pallas as pl
from jax.experimental.pallas import tpu as pltpu


def cab_kernel(x_ref, w1t_ref, w2t_ref, o_ref, pooled_ref, *,
               n_tile, hw_total, hw_tile, inv_hw):
    # x_ref:    (TN, C, THW) f32 tile of the input
    # w1t_ref:  (C, R)  f32 (fc1 weight, pre-transposed on host)
    # w2t_ref:  (R, Cout) f32 (fc2 weight, pre-transposed on host)
    # o_ref:    (TN, Cout) f32 output block
    # pooled_ref: VMEM scratch (2*TN, C): rows [0:TN]=running sum, [TN:]=running max
    k = pl.program_id(1)

    @pl.when(k == 0)
    def _init():
        c = pooled_ref.shape[1]
        pooled_ref[:n_tile, :] = jnp.zeros((n_tile, c), jnp.float32)
        pooled_ref[n_tile:, :] = jnp.full((n_tile, c), -jnp.inf, jnp.float32)

    x = x_ref[...]  # (TN, C, THW)

    if hw_total % hw_tile != 0:
        # Mask the out-of-range lanes of the final partial tile.
        lane = jax.lax.broadcasted_iota(jnp.int32, x.shape, 2)
        valid = (k * hw_tile + lane) < hw_total
        x_sum = jnp.where(valid, x, 0.0)
        x_max = jnp.where(valid, x, -jnp.inf)
    else:
        x_sum = x
        x_max = x

    # Partial spatial reductions (XLU lane-reduce + VPU add/max) — hidden
    # under the DMA of the next tile.
    pooled_ref[:n_tile, :] = pooled_ref[:n_tile, :] + jnp.sum(x_sum, axis=-1)
    pooled_ref[n_tile:, :] = jnp.maximum(pooled_ref[n_tile:, :],
                                         jnp.max(x_max, axis=-1))

    @pl.when(k == pl.num_programs(1) - 1)
    def _finish():
        p = pooled_ref[...]                                   # (2*TN, C)
        # Scale only the sum-half by 1/HW to turn it into the mean.
        row = jax.lax.broadcasted_iota(jnp.int32, p.shape, 0)
        p = jnp.where(row < n_tile, p * inv_hw, p)
        # Fused MLP for both pooled vectors: one fc1 + ReLU + one fc2.
        h = jnp.maximum(
            jnp.dot(p, w1t_ref[...], preferred_element_type=jnp.float32), 0.0)
        y = jnp.dot(h, w2t_ref[...], preferred_element_type=jnp.float32)  # (2*TN, Cout)
        out = y[:n_tile, :] + y[n_tile:, :]
        o_ref[...] = jax.nn.sigmoid(out).astype(o_ref.dtype)


def _choose_hw_tile(hw, n_tile, c, tile_bytes=4 << 20):
    """Pick a spatial tile (multiple of 128 or the full extent) whose
    double-buffered footprint stays well inside scoped VMEM on all chips."""
    if hw <= 128:
        return hw
    budget = max(128, tile_bytes // (n_tile * c * 4))
    if budget >= hw:
        return hw
    return (budget // 128) * 128


def cab_forward(x_nchw, w1, w2, *, hw_tile=None):
    """x_nchw: (N, C, H, W) float32; w1: (R, C); w2: (Cout, R) -> (N, Cout, 1, 1)."""
    N, C, H, W = x_nchw.shape
    HW = H * W
    R = w1.shape[0]
    Cout = w2.shape[0]
    assert w1.shape[1] == C and w2.shape[1] == R

    x_flat = x_nchw.reshape(N, C, HW).astype(jnp.float32)
    # Pre-transpose the 1x1-conv weights once on the host (no in-kernel XLU).
    w1t = jnp.asarray(w1, jnp.float32).T   # (C, R)
    w2t = jnp.asarray(w2, jnp.float32).T   # (R, Cout)

    # Batch tiling: TN must be a multiple of 8 or the full batch (output
    # block sublane constraint). A parallel batch axis lets Mosaic shard
    # across the two TensorCores on v7x.
    n_tile = 8 if (N >= 8 and N % 8 == 0) else N
    n_steps = N // n_tile

    if hw_tile is None:
        hw_tile = _choose_hw_tile(HW, n_tile, C)
    hw_steps = pl.cdiv(HW, hw_tile)

    kernel = partial(cab_kernel, n_tile=n_tile, hw_total=HW,
                     hw_tile=hw_tile, inv_hw=1.0 / float(HW))

    out = pl.pallas_call(
        kernel,
        out_shape=jax.ShapeDtypeStruct((N, Cout), jnp.float32),
        grid=(n_steps, hw_steps),
        in_specs=[
            pl.BlockSpec((n_tile, C, hw_tile), lambda n, k: (n, 0, k)),
            pl.BlockSpec((C, R), lambda n, k: (0, 0)),
            pl.BlockSpec((R, Cout), lambda n, k: (0, 0)),
        ],
        out_specs=pl.BlockSpec((n_tile, Cout), lambda n, k: (n, 0)),
        scratch_shapes=[pltpu.VMEM((2 * n_tile, C), jnp.float32)],
        compiler_params=pltpu.CompilerParams(
            dimension_semantics=("parallel", "arbitrary"),
            vmem_limit_bytes=32 * 1024 * 1024,
        ),
    )(x_flat, w1t, w2t)

    return out.reshape(N, Cout, 1, 1)


def make_cab_params(key, in_channels, out_channels=None, ratio=16):
    """Deterministic init matching CAB.__init__ with scheme='normal' (std=0.02)."""
    if in_channels < ratio:
        ratio = in_channels
    reduced = in_channels // ratio
    if out_channels is None:
        out_channels = in_channels
    k1, k2 = jax.random.split(key)
    w1 = 0.02 * jax.random.normal(k1, (reduced, in_channels), dtype=jnp.float32)
    w2 = 0.02 * jax.random.normal(k2, (out_channels, reduced), dtype=jnp.float32)
    return w1, w2


def cab_reference(x, w1, w2):
    """Plain-JAX reference for verification."""
    avg = jnp.mean(x, axis=(2, 3))          # (N, C)
    mx = jnp.max(x, axis=(2, 3))            # (N, C)

    def mlp(p):
        h = jnp.maximum(p @ w1.T, 0.0)
        return h @ w2.T

    out = mlp(avg) + mlp(mx)
    return jax.nn.sigmoid(out)[:, :, None, None]


if __name__ == "__main__":
    key = jax.random.PRNGKey(0)
    kx, kp = jax.random.split(key)

    N, C, H, W = 2, 4, 16, 16
    x = jax.random.normal(kx, (N, C, H, W), dtype=jnp.float32)
    w1, w2 = make_cab_params(kp, in_channels=C, ratio=16)

    # hw_tile=128 forces a 2-step spatial reduction so the grid/accumulator
    # path is exercised even at this small test size.
    out = cab_forward(x, w1, w2, hw_tile=128)
    out = jax.block_until_ready(out)

    ref = cab_reference(x, w1, w2)
    assert out.shape == (N, C, 1, 1), out.shape
    assert jnp.allclose(out, ref, atol=1e-5, rtol=1e-5), (
        f"max abs err {jnp.max(jnp.abs(out - ref))}")

    print("KERNEL_OK")
</pallas_src>

<mosaic_0001>
module attributes {stable_mosaic.version = 11 : i64} {
  func.func @cab_kernel(%arg0: i32, %arg1: i32, %arg2: memref<2x4x128xf32, #tpu.memory_space<vmem>>, %arg3: memref<4x1xf32, #tpu.memory_space<vmem>>, %arg4: memref<1x4xf32, #tpu.memory_space<vmem>>, %arg5: memref<2x4xf32, #tpu.memory_space<vmem>>, %arg6: memref<4x4xf32, #tpu.memory_space<vmem>>) attributes {dimension_semantics = [#tpu.dimension_semantics<parallel>, #tpu.dimension_semantics<arbitrary>], iteration_bounds = array<i64: 1, 2>, scalar_prefetch = 0 : i64, scratch_operands = 1 : i64, tpu.core_type = #tpu.core_type<tc>, window_params = [{transform_indices = @transform_0, window_bounds = array<i64: 2, 4, 128>}, {pipeline_mode = #tpu.pipeline_mode<synchronous>, transform_indices = @transform_1, window_bounds = array<i64: 4, 1>}, {pipeline_mode = #tpu.pipeline_mode<synchronous>, transform_indices = @transform_2, window_bounds = array<i64: 1, 4>}, {transform_indices = @transform_3, window_bounds = array<i64: 2, 4>}]} {
    %c0_i32 = arith.constant 0 : i32
    %0 = arith.cmpi eq, %arg1, %c0_i32 : i32
    %1 = arith.extui %0 : i1 to i32
    %c0_i32_0 = arith.constant 0 : i32
    %2 = arith.cmpi ne, %1, %c0_i32_0 : i32
    scf.if %2 {
      %cst_12 = arith.constant 0.000000e+00 : f32
      %15 = vector.broadcast %cst_12 : f32 to vector<2x4xf32>
      %c0_13 = arith.constant 0 : index
      %c0_14 = arith.constant 0 : index
      %16 = vector.load %arg6[%c0_13, %c0_14] : memref<4x4xf32, #tpu.memory_space<vmem>>, vector<2x4xf32>
      tpu.vector_store %arg6[%c0_13, %c0_14], %15 {strides = array<i32>} : memref<4x4xf32, #tpu.memory_space<vmem>>, vector<2x4xf32>,
      %cst_15 = arith.constant 0xFF800000 : f32
      %17 = vector.broadcast %cst_15 : f32 to vector<2x4xf32>
      %c2_16 = arith.constant 2 : index
      %c0_17 = arith.constant 0 : index
      %18 = vector.load %arg6[%c2_16, %c0_17] : memref<4x4xf32, #tpu.memory_space<vmem>>, vector<2x4xf32>
      tpu.vector_store %arg6[%c2_16, %c0_17], %17 {strides = array<i32>} : memref<4x4xf32, #tpu.memory_space<vmem>>, vector<2x4xf32>,
    } else {
    }
    %c0 = arith.constant 0 : index
    %c0_1 = arith.constant 0 : index
    %c0_2 = arith.constant 0 : index
    %3 = vector.load %arg2[%c0, %c0_1, %c0_2] : memref<2x4x128xf32, #tpu.memory_space<vmem>>, vector<2x4x128xf32>
    %c0_3 = arith.constant 0 : index
    %c0_4 = arith.constant 0 : index
    %4 = vector.load %arg6[%c0_3, %c0_4] : memref<4x4xf32, #tpu.memory_space<vmem>>, vector<2x4xf32>
    %cst = arith.constant dense<0.000000e+00> : vector<2x4xf32>
    %5 = vector.multi_reduction <add>, %3, %cst [2] : vector<2x4x128xf32> to vector<2x4xf32>
    %6 = arith.addf %4, %5 : vector<2x4xf32>
    %c0_5 = arith.constant 0 : index
    %c0_6 = arith.constant 0 : index
    %7 = vector.load %arg6[%c0_5, %c0_6] : memref<4x4xf32, #tpu.memory_space<vmem>>, vector<2x4xf32>
    tpu.vector_store %arg6[%c0_5, %c0_6], %6 {strides = array<i32>} : memref<4x4xf32, #tpu.memory_space<vmem>>, vector<2x4xf32>,
    %c2 = arith.constant 2 : index
    %c0_7 = arith.constant 0 : index
    %8 = vector.load %arg6[%c2, %c0_7] : memref<4x4xf32, #tpu.memory_space<vmem>>, vector<2x4xf32>
    %cst_8 = arith.constant dense<0xFF800000> : vector<2x4xf32>
    %9 = vector.multi_reduction <maximumf>, %3, %cst_8 [2] : vector<2x4x128xf32> to vector<2x4xf32>
    %10 = arith.maximumf %8, %9 : vector<2x4xf32>
    %c2_9 = arith.constant 2 : index
    %c0_10 = arith.constant 0 : index
    %11 = vector.load %arg6[%c2_9, %c0_10] : memref<4x4xf32, #tpu.memory_space<vmem>>, vector<2x4xf32>
    tpu.vector_store %arg6[%c2_9, %c0_10], %10 {strides = array<i32>} : memref<4x4xf32, #tpu.memory_space<vmem>>, vector<2x4xf32>,
    %c1_i32 = arith.constant 1 : i32
    %12 = arith.cmpi eq, %arg1, %c1_i32 : i32
    %13 = arith.extui %12 : i1 to i32
    %c0_i32_11 = arith.constant 0 : i32
    %14 = arith.cmpi ne, %13, %c0_i32_11 : i32
    scf.if %14 {
      %c0_12 = arith.constant 0 : index
      %c0_13 = arith.constant 0 : index
      %15 = vector.load %arg6[%c0_12, %c0_13] : memref<4x4xf32, #tpu.memory_space<vmem>>, vector<4x4xf32>
      %16 = tpu.iota {dimensions = array<i32: 0>} : vector<4x4xi32>
      %c2_i32 = arith.constant 2 : i32
      %17 = vector.broadcast %c2_i32 : i32 to vector<4x4xi32>
      %18 = arith.cmpi slt, %16, %17 : vector<4x4xi32>
      %cst_14 = arith.constant 3.906250e-03 : f32
      %19 = vector.broadcast %cst_14 : f32 to vector<4x4xf32>
      %20 = arith.mulf %15, %19 : vector<4x4xf32>
      %21 = arith.select %18, %20, %15 : vector<4x4xi1>, vector<4x4xf32>
      %c0_15 = arith.constant 0 : index
      %c0_16 = arith.constant 0 : index
      %22 = vector.load %arg3[%c0_15, %c0_16] : memref<4x1xf32, #tpu.memory_space<vmem>>, vector<4x1xf32>
      %cst_17 = arith.constant dense<0.000000e+00> : vector<4x1xf32>
      %23 = tpu.matmul %21, %22, %cst_17 {dimension_numbers = #tpu.dot_dimension_numbers<[1], [0], [0], [1], [0, 0, 1, 1], [], []>} : vector<4x4xf32>, vector<4x1xf32>, vector<4x1xf32> -> vector<4x1xf32>
      %cst_18 = arith.constant 0.000000e+00 : f32
      %24 = vector.broadcast %cst_18 : f32 to vector<4x1xf32>
      %25 = arith.maximumf %23, %24 : vector<4x1xf32>
      %c0_19 = arith.constant 0 : index
      %c0_20 = arith.constant 0 : index
      %26 = vector.load %arg4[%c0_19, %c0_20] : memref<1x4xf32, #tpu.memory_space<vmem>>, vector<1x4xf32>
      %cst_21 = arith.constant dense<0.000000e+00> : vector<4x4xf32>
      %27 = tpu.matmul %25, %26, %cst_21 {dimension_numbers = #tpu.dot_dimension_numbers<[1], [0], [0], [1], [0, 0, 1, 1], [], []>} : vector<4x1xf32>, vector<1x4xf32>, vector<4x4xf32> -> vector<4x4xf32>
      %28 = vector.extract_strided_slice %27 {offsets = [0, 0], sizes = [2, 4], strides = [1, 1]} : vector<4x4xf32> to vector<2x4xf32>
      %29 = vector.extract_strided_slice %27 {offsets = [2, 0], sizes = [2, 4], strides = [1, 1]} : vector<4x4xf32> to vector<2x4xf32>
      %30 = arith.addf %28, %29 : vector<2x4xf32>
      %31 = arith.negf %30 : vector<2x4xf32>
      %32 = math.exp %31 : vector<2x4xf32>
      %cst_22 = arith.constant 1.000000e+00 : f32
      %33 = vector.broadcast %cst_22 : f32 to vector<2x4xf32>
      %34 = arith.addf %33, %32 : vector<2x4xf32>
      %35 = arith.divf %33, %34 : vector<2x4xf32>
      %c0_23 = arith.constant 0 : index
      %c0_24 = arith.constant 0 : index
      %36 = vector.load %arg5[%c0_23, %c0_24] : memref<2x4xf32, #tpu.memory_space<vmem>>, vector<2x4xf32>
      tpu.vector_store %arg5[%c0_23, %c0_24], %35 {strides = array<i32>} : memref<2x4xf32, #tpu.memory_space<vmem>>, vector<2x4xf32>,
    } else {
    }
    return
  }
  func.func @transform_0(%arg0: i32, %arg1: i32) -> (i32, i32, i32) {
    %c0_i32 = arith.constant 0 : i32
    %c0_i32_0 = arith.constant 0 : i32
    return %arg0, %c0_i32, %arg1 : i32, i32, i32
  }
  func.func @transform_1(%arg0: i32, %arg1: i32) -> (i32, i32) {
    %c0_i32 = arith.constant 0 : i32
    %c0_i32_0 = arith.constant 0 : i32
    %c0_i32_1 = arith.constant 0 : i32
    return %c0_i32, %c0_i32_0 : i32, i32
  }
  func.func @transform_2(%arg0: i32, %arg1: i32) -> (i32, i32) {
    %c0_i32 = arith.constant 0 : i32
    %c0_i32_0 = arith.constant 0 : i32
    %c0_i32_1 = arith.constant 0 : i32
    return %c0_i32, %c0_i32_0 : i32, i32
  }
  func.func @transform_3(%arg0: i32, %arg1: i32) -> (i32, i32) {
    %c0_i32 = arith.constant 0 : i32
    %c0_i32_0 = arith.constant 0 : i32
    return %arg0, %c0_i32 : i32, i32
  }
}

</mosaic_0001>

<llo_original>
// kernel: tpu_custom_call.1
$region0: #{tpu_custom_call.1}
  #allocation0 [shape = 'u32[]', space=smem, size = 0x4, offset = 0x4, fixed_abs, tag = 'smem constant byte address 0x4 - core index']
  #allocation1 [shape = 'u32[144,128]{1,0:T(1,128)}', space=vmem, size = 0x12000, scoped, tag = 'internal scratch']
  #allocation2 [shape = 'f32[4,4]{1,0:T(4,128)}', space=vmem, size = 0x800, scoped, tag = 'scratch operand']
  %s0 = inlined_call_operand.hbm [shape: f32[2,4,256], index: 0, kind: input, shape index: {}]
  %s1 = inlined_call_operand.vmem [shape: f32[4,1], index: 1, kind: input, shape index: {}]
  %s2 = inlined_call_operand.vmem [shape: f32[1,4], index: 2, kind: input, shape index: {}]
  %s3 = inlined_call_operand.hbm [shape: f32[2,4], index: 3, kind: output, shape index: {}]
  %s4 = sld [smem:[#allocation0]]
  $region57: #{tpu_custom_call.1} parent=0
    _
  %s6 = ssub.s32 1, %s4
  %s7 = scalar_select 0, %s6, %s4
  $region1: #{tpu_custom_call.1} parent=0
    #allocation3 [shape = 'u8[8192]{0}', space=vmem, size = 0x2000, scoped, tag = 'input window, operand 0']
    #allocation4 [shape = 's32[2]{0}', space=sflag, size = 0x8, scoped, tag = 'scoped memory for tpu_custom_call.1']
    #allocation5 [shape = 's32[2]{0}', space=sflag, size = 0x8, scoped, tag = 'scoped memory for tpu_custom_call.1']
    #allocation6 [shape = 'u8[1024]{0}', space=vmem, size = 0x400, scoped, tag = 'output window, operand 0, single buffered']
    %8 = vsyncpa [#allocation4], 0
    %s9 = scalar_lea.sflag [#allocation4], 1
    %10 = vsyncpa %s9, 0
    %11 = vsyncpa [#allocation5], 0
    loop: start=0, step=1, limit=4
    $region2: #{tpu_custom_call.1} parent=1 // loop_pre_header
      _
    $region3: #{tpu_custom_call.1} parent=1 // loop_header
      %s13 = sphi 0, %s17
      %p14 = scmp.ge.s32.totalorder %s13, 4
      %s20 = sphi 0, %s32
      %s21 = sphi 0, %s28
      %s22 = sphi 0, %s20
      %s23 = sphi 0, %s21
      %s24 = sphi 0, %s22
      %s25 = sphi 0, %s23
      %s37 = sphi 0, %s39
      %s40 = sphi 0, %s37
      %s41 = sphi 0, %s40
      %s57 = sphi 0, %s41
      %s61 = sphi 0, %s61
      %s63 = sphi 0, %s61
      %s64 = sphi 0, %s63
      %s78 = sphi 0, %s64
      %s82 = sphi 0, %s82
      %s84 = sphi 0, %s82
      %s85 = sphi 0, %s84
      %s99 = sphi 0, %s85
      %s105 = sphi 0, %s107
      %s108 = sphi 0, %s105
      %s109 = sphi 0, %s108
      %s125 = sphi 0, %s109
    $region4: #{tpu_custom_call.1} parent=1 // loop_header_branch
      %16 = sbr.rel (%p14) target = $region8
    $region5: #{tpu_custom_call.1} parent=1 // loop_body
      %s18 = ssub.s32 %s13, 1
      %s19 = ssub.s32 %s13, 2
      %s26 = sadd.s32 1, %s21
      %p27 = scmp.ge.s32.totalorder %s26, 2
      %s28 = scalar_select %p27, 0, %s26
      %s29 = sadd.s32 1, %s20
      %s30 = scalar_select %p27, %s29, %s20
      %p31 = scmp.ge.s32.totalorder %s30, 1
      %s32 = scalar_select %p31, 0, %s30
      %s33 = ssub.s32 %s20, %s32
      %s34 = ssub.s32 %s21, %s28
      %s35 = sor.u32 %s33, %s34
      %p36 = scmp.eq.s32.totalorder %s35, 0
      %s38 = sadd.s32 %s37, 1
      %s39 = scalar_select %p36, %s37, %s38
      %p42 = pneg %p36
      %p43 = scmp.eq.s32.totalorder %s13, 1
      %p44 = por %p42, %p43
      %p45 = scmp.ne.s32.totalorder %s37, %s40
      %p46 = scmp.eq.s32.totalorder %s13, 0
      %p47 = por %p45, %p46
      %p48 = scmp.ne.s32.totalorder %s37, %s40
      %p49 = scmp.eq.s32.totalorder %s18, 1
      %p50 = por %p48, %p49
      %p51 = scmp.ne.s32.totalorder %s40, %s41
      %p52 = scmp.eq.s32.totalorder %s18, 0
      %p53 = por %p51, %p52
      %p54 = scmp.ne.s32.totalorder %s40, %s41
      %p55 = scmp.eq.s32.totalorder %s19, 1
      %p56 = por %p54, %p55
      %p58 = scmp.ne.s32.totalorder %s41, %s57
      %p59 = scmp.eq.s32.totalorder %s19, 0
      %p60 = por %p58, %p59
      %s62 = sadd.s32 %s61, 1
      %p65 = scmp.eq.s32.totalorder %s13, 1
      %p66 = scmp.ne.s32.totalorder %s61, %s63
      %p67 = scmp.eq.s32.totalorder %s13, 0
      %p68 = por %p66, %p67
      %p69 = scmp.ne.s32.totalorder %s61, %s63
      %p70 = scmp.eq.s32.totalorder %s18, 1
      %p71 = por %p69, %p70
      %p72 = scmp.ne.s32.totalorder %s63, %s64
      %p73 = scmp.eq.s32.totalorder %s18, 0
      %p74 = por %p72, %p73
      %p75 = scmp.ne.s32.totalorder %s63, %s64
      %p76 = scmp.eq.s32.totalorder %s19, 1
      %p77 = por %p75, %p76
      %p79 = scmp.ne.s32.totalorder %s64, %s78
      %p80 = scmp.eq.s32.totalorder %s19, 0
      %p81 = por %p79, %p80
      %s83 = sadd.s32 %s82, 1
      %p86 = scmp.eq.s32.totalorder %s13, 1
      %p87 = scmp.ne.s32.totalorder %s82, %s84
      %p88 = scmp.eq.s32.totalorder %s13, 0
      %p89 = por %p87, %p88
      %p90 = scmp.ne.s32.totalorder %s82, %s84
      %p91 = scmp.eq.s32.totalorder %s18, 1
      %p92 = por %p90, %p91
      %p93 = scmp.ne.s32.totalorder %s84, %s85
      %p94 = scmp.eq.s32.totalorder %s18, 0
      %p95 = por %p93, %p94
      %p96 = scmp.ne.s32.totalorder %s84, %s85
      %p97 = scmp.eq.s32.totalorder %s19, 1
      %p98 = por %p96, %p97
      %p100 = scmp.ne.s32.totalorder %s85, %s99
      %p101 = scmp.eq.s32.totalorder %s19, 0
      %p102 = por %p100, %p101
      %s103 = ssub.s32 %s20, %s32
      %p104 = scmp.eq.s32.totalorder %s103, 0
      %s106 = sadd.s32 %s105, 1
      %s107 = scalar_select %p104, %s105, %s106
      %p110 = pneg %p104
      %p111 = scmp.eq.s32.totalorder %s13, 1
      %p112 = por %p110, %p111
      %p113 = scmp.ne.s32.totalorder %s105, %s108
      %p114 = scmp.eq.s32.totalorder %s13, 0
      %p115 = por %p113, %p114
      %p116 = scmp.ne.s32.totalorder %s105, %s108
      %p117 = scmp.eq.s32.totalorder %s18, 1
      %p118 = por %p116, %p117
      %p119 = scmp.ne.s32.totalorder %s108, %s109
      %p120 = scmp.eq.s32.totalorder %s18, 0
      %p121 = por %p119, %p120
      %p122 = scmp.ne.s32.totalorder %s108, %s109
      %p123 = scmp.eq.s32.totalorder %s19, 1
      %p124 = por %p122, %p123
      %p126 = scmp.ne.s32.totalorder %s109, %s125
      %p127 = scmp.eq.s32.totalorder %s19, 0
      %p128 = por %p126, %p127
      %p129 = scmp.le.s32.totalorder 1, %s13
      %p130 = scmp.lt.s32.totalorder %s13, 3
      %p131 = pnand %p129, %p130
      %p132 = pneg %p131
      // Predicated region
      $region9: #{tpu_custom_call.1} parent=5 // pred_check
        _
      $region10: #{tpu_custom_call.1} parent=5 // pred_check_branch
        %134 = sbr.rel (%p131) target = $region12
      $region11: #{tpu_custom_call.1} parent=5 // pred_region
        %s135 = ssub.s32 %s13, 1
        // Predicated region
        $region13: #{tpu_custom_call.1} parent=11 // pred_check
          %p136 = pneg %p74
        $region14: #{tpu_custom_call.1} parent=11 // pred_check_branch
          %138 = sbr.rel (%p136) target = $region16
        $region15: #{tpu_custom_call.1} parent=11 // pred_region
          _
        $region16: #{tpu_custom_call.1} parent=11 // pred_fallthru
          _
        // Predicated region
        $region17: #{tpu_custom_call.1} parent=11 // pred_check
          %p139 = pneg %p95
        $region18: #{tpu_custom_call.1} parent=11 // pred_check_branch
          %141 = sbr.rel (%p139) target = $region20
        $region19: #{tpu_custom_call.1} parent=11 // pred_region
          _
        $region20: #{tpu_custom_call.1} parent=11 // pred_fallthru
          _
      $region12: #{tpu_custom_call.1} parent=5 // pred_fallthru
        _
      %p142 = scmp.lt.s32.totalorder %s13, 2
      // Predicated region
      $region21: #{tpu_custom_call.1} parent=5 // pred_check
        %p143 = pneg %p142
      $region22: #{tpu_custom_call.1} parent=5 // pred_check_branch
        %145 = sbr.rel (%p143) target = $region24
      $region23: #{tpu_custom_call.1} parent=5 // pred_region
        // Predicated region
        $region25: #{tpu_custom_call.1} parent=23 // pred_check
          %p146 = pneg %p47
        $region26: #{tpu_custom_call.1} parent=23 // pred_check_branch
          %148 = sbr.rel (%p146) target = $region28
        $region27: #{tpu_custom_call.1} parent=23 // pred_region
          %s149 = sand.u32 %s37, 1
          %s150 = scalar_lea.sflag [#allocation4], %s149
          %s151 = sand.u32 %s37, 1
          %s152 = smul.addr %s151, 8
          %s153 = scalar_lea.vmem [#allocation3], %s152
          %s154 = smul.u32 2, %s20
          %s156 = ssub.s32 128, 128
          %157 = vsyncadd %s150, %s156
          %s158 = smul.addr %s154, 2
          %s159 = sadd.s32 %s21, %s158
          %s160 = smul.addr %s159, 64
          %s161 = scalar_lea.hbm %s0, %s160
          %s162 = sshll.u32 %s153, 4
          %s163 = int_to_ptr.vmem [resolvable:$true] %s162
          %168 = dma.hbm_to_vmem [thread:$0]  %s161, 128, %s163, %s150, 128, 64, 4
        $region28: #{tpu_custom_call.1} parent=23 // pred_fallthru
          _
      $region24: #{tpu_custom_call.1} parent=5 // pred_fallthru
        _
      %p169 = scmp.le.s32.totalorder 1, %s13
      %p170 = scmp.lt.s32.totalorder %s13, 3
      %p171 = pnand %p169, %p170
      %p172 = pneg %p171
      // Predicated region
      $region29: #{tpu_custom_call.1} parent=5 // pred_check
        _
      $region30: #{tpu_custom_call.1} parent=5 // pred_check_branch
        %174 = sbr.rel (%p171) target = $region32
      $region31: #{tpu_custom_call.1} parent=5 // pred_region
        %s175 = ssub.s32 %s13, 1
        %s176 = sand.u32 %s40, 1
        %s177 = scalar_lea.sflag [#allocation4], %s176
        %s178 = sand.u32 %s40, 1
        %s179 = smul.addr %s178, 8
        %s180 = scalar_lea.vmem [#allocation3], %s179
        // Predicated region
        $region33: #{tpu_custom_call.1} parent=31 // pred_check
          %p181 = pneg %p53
        $region34: #{tpu_custom_call.1} parent=31 // pred_check_branch
          %183 = sbr.rel (%p181) target = $region36
        $region35: #{tpu_custom_call.1} parent=31 // pred_region
          %184 = dma.done %s177, 128
        $region36: #{tpu_custom_call.1} parent=31 // pred_fallthru
          _
        %s185 = sand.u32 %s40, 1
        %s186 = scalar_lea.sflag [#allocation4], %s185
        %s187 = sand.u32 %s40, 1
        %s188 = smul.addr %s187, 8
        %s189 = scalar_lea.vmem [#allocation3], %s188
        %p190 = pneg %p53
        %p191 = pneg %p50
        %p192 = pneg %p74
        %p193 = pneg %p71
        %p194 = pneg %p95
        %p195 = pneg %p92
        %p196 = pneg %p121
        %p197 = pneg %p118
        %s198 = smul.u32 2, %s22
        %p199 = scmp.eq.s32.totalorder %s23, 0
        // Predicated region
        $region37: #{tpu_custom_call.1} parent=31 // pred_check
          %p200 = pneg %p199
        $region38: #{tpu_custom_call.1} parent=31 // pred_check_branch
          %202 = sbr.rel (%p200) target = $region40
        $region39: #{tpu_custom_call.1} parent=31 // pred_region
          %vm203 = vcmask 25600
          %204 = vst.msk [vmem:[#allocation2] sm:$0x3] %vm203, 0.0
          %205 = vst.msk [vmem:[#allocation2 + $0x2] sm:$0x3] %vm203, -inf
        $region40: #{tpu_custom_call.1} parent=31 // pred_fallthru
          _
        %v206 = vld [vmem:[%s180] sm:$0xf]
        %v207 = vld [vmem:[%s180 + $0x4] sm:$0xf]
        %v208 = vld [vmem:[#allocation2] sm:$0x3]
        %vm209 = vcmask 1043456
        %v210 = vsel %vm209, %v206, 0.0
        %211 = vadd.xlane.f32.xlu0 %v210
        %v212 = vpop.xlane.xlu0 %211
        %v213 = vsel %vm209, %v207, 0.0
        %214 = vadd.xlane.f32.xlu0 %v213
        %v215 = vpop.xlane.xlu0 %214
        %v218 = vlaneseq
        %v219 = vand.u32 %v218, 127
        %v220 = vlaneseq
        %v221 = vshrl.u32 %v220, 7
        %v222 = vsub.s32 %v219, %v221
        %v223 = vrot.slane %v212, %v222
        %v224 = vlaneseq
        %v225 = vshrl.u32 %v224, 7
        %v226 = vsub.s32 %v219, %v225
        %v227 = vrot.slane %v215, %v226
        %vm228 = vcmask 1041409
        %v229 = vsel %vm228, %v227, %v223
        %v231 = vadd.f32 %v208, %v229
        %vm232 = vcmask 25600
        %233 = vst.msk [vmem:[#allocation2] sm:$0x3] %vm232, %v231
        %v234 = vld [vmem:[#allocation2 + $0x2] sm:$0x3]
        %v235 = vsel %vm209, %v206, -inf
        %236 = vmax.xlane.f32.xlu0 %v235
        %v237 = vpop.xlane.xlu0 %236
        %v238 = vsel %vm209, %v207, -inf
        %239 = vmax.xlane.f32.xlu0 %v238
        %v240 = vpop.xlane.xlu0 %239
        %v243 = vlaneseq
        %v244 = vshrl.u32 %v243, 7
        %v245 = vsub.s32 %v219, %v244
        %v246 = vrot.slane %v237, %v245
        %v247 = vlaneseq
        %v248 = vshrl.u32 %v247, 7
        %v249 = vsub.s32 %v219, %v248
        %v250 = vrot.slane %v240, %v249
        %v251 = vsel %vm228, %v250, %v246
        %v253 = vmax.f32 %v234, %v251
        %254 = vst.msk [vmem:[#allocation2 + $0x2] sm:$0x3] %vm232, %v253
        %p255 = scmp.eq.s32.totalorder %s23, 1
        // Predicated region
        $region41: #{tpu_custom_call.1} parent=31 // pred_check
          %p256 = pneg %p255
        $region42: #{tpu_custom_call.1} parent=31 // pred_check_branch
          %258 = sbr.rel (%p256) target = $region44
        $region43: #{tpu_custom_call.1} parent=31 // pred_region
          %v259 = vld [vmem:[#allocation2] sm:$0xf]
          %v260 = vlaneseq
          %v261 = vshrl.u32 %v260, 7
          %vm262 = vcmp.lt.s32.totalorder %v261, 2
          %v263 = vmul.f32 %v259, 0.00390625
          %v264 = vsel %vm262, %v263, %v259
          %v265 = vld [vmem:[%s1] sm:$0xf]
          %vm266 = vcmask 31744
          %v268 = vsel %vm266, %v264, 0
          %v271 = vsel %vm209, %v265, 0
          %273 = vmatprep.subr.mxu0 0.0
          %274 = vmatpush1.msra.mxu0 %v271
          %275 = vmatprep.subr.mxu0 0.0
          %276 = vmatpush1.msra.mxu0 0.0
          %277 = vmatprep.subr.mxu0 0.0
          %278 = vmatpush1.msra.mxu0 0.0
          %279 = vmatprep.subr.mxu0 0.0
          %280 = vmatpush1.msra.mxu0 0.0
          %281 = vmatprep.subr.mxu0 0.0
          %282 = vmatpush1.msra.mxu0 0.0
          %283 = vmatprep.subr.mxu0 0.0
          %284 = vmatpush1.msra.mxu0 0.0
          %285 = vmatprep.subr.mxu0 0.0
          %286 = vmatpush1.msra.mxu0 0.0
          %287 = vmatprep.subr.mxu0 0.0
          %288 = vmatpush1.msra.mxu0 0.0
          %289 = vmatprep.subr.mxu0 0.0
          %290 = vmatpush1.msra.mxu0 0.0
          %291 = vmatprep.subr.mxu0 0.0
          %292 = vmatpush1.msra.mxu0 0.0
          %293 = vmatprep.subr.mxu0 0.0
          %294 = vmatpush1.msra.mxu0 0.0
          %295 = vmatprep.subr.mxu0 0.0
          %296 = vmatpush1.msra.mxu0 0.0
          %297 = vmatprep.subr.mxu0 0.0
          %298 = vmatpush1.msra.mxu0 0.0
          %299 = vmatprep.subr.mxu0 0.0
          %300 = vmatpush1.msra.mxu0 0.0
          %301 = vmatprep.subr.mxu0 0.0
          %302 = vmatpush1.msra.mxu0 0.0
          %303 = vmatprep.subr.mxu0 0.0
          %304 = vmatpush1.msra.mxu0 0.0
          %305 = vmatprep.subr.mxu0 0.0
          %306 = vmatpush1.msra.mxu0 0.0
          %307 = vmatprep.subr.mxu0 0.0
          %308 = vmatpush1.msra.mxu0 0.0
          %309 = vmatprep.subr.mxu0 0.0
          %310 = vmatpush1.msra.mxu0 0.0
          %311 = vmatprep.subr.mxu0 0.0
          %312 = vmatpush1.msra.mxu0 0.0
          %313 = vmatprep.subr.mxu0 0.0
          %314 = vmatpush1.msra.mxu0 0.0
          %315 = vmatprep.subr.mxu0 0.0
          %316 = vmatpush1.msra.mxu0 0.0
          %317 = vmatprep.subr.mxu0 0.0
          %318 = vmatpush1.msra.mxu0 0.0
          %319 = vmatprep.subr.mxu0 0.0
          %320 = vmatpush1.msra.mxu0 0.0
          %321 = vmatprep.subr.mxu0 0.0
          %322 = vmatpush1.msra.mxu0 0.0
          %323 = vmatprep.subr.mxu0 0.0
          %324 = vmatpush1.msra.mxu0 0.0
          %325 = vmatprep.subr.mxu0 0.0
          %326 = vmatpush1.msra.mxu0 0.0
          %327 = vmatprep.subr.mxu0 0.0
          %328 = vmatpush1.msra.mxu0 0.0
          %329 = vmatprep.subr.mxu0 0.0
          %330 = vmatpush1.msra.mxu0 0.0
          %331 = vmatprep.subr.mxu0 0.0
          %332 = vmatpush1.msra.mxu0 0.0
          %333 = vmatprep.subr.mxu0 0.0
          %334 = vmatpush1.msra.mxu0 0.0
          %335 = vmatprep.subr.mxu0 0.0
          %336 = vmatpush1.msra.mxu0 0.0
          %337 = vmatprep.mubr.f32.mxu0 0.0
          %338 = vmatmul.mubr.f32.gmra.mrb[0].mxu0 %v268
          %v339 = vpop.f32.mrb[0].mxu0
          %v340 = vadd.f32 0.0, %v339
          %v341 = vpop.f32.mrb[0].mxu0
          %342 = vdwg.mxu0
          %v343 = vmax.f32 %v340, 0.0
          %v344 = vld [vmem:[%s2] sm:$0x1]
          %vm345 = vcmask 7168
          %v347 = vsel %vm345, %v343, 0
          %vm349 = vcmask 1040384
          %v351 = vsel %vm349, %v344, 0
          %353 = vmatprep.subr.mxu0 0.0
          %354 = vmatpush1.msra.mxu0 %v351
          %355 = vmatprep.subr.mxu0 0.0
          %356 = vmatpush1.msra.mxu0 0.0
          %357 = vmatprep.subr.mxu0 0.0
          %358 = vmatpush1.msra.mxu0 0.0
          %359 = vmatprep.subr.mxu0 0.0
          %360 = vmatpush1.msra.mxu0 0.0
          %361 = vmatprep.subr.mxu0 0.0
          %362 = vmatpush1.msra.mxu0 0.0
          %363 = vmatprep.subr.mxu0 0.0
          %364 = vmatpush1.msra.mxu0 0.0
          %365 = vmatprep.subr.mxu0 0.0
          %366 = vmatpush1.msra.mxu0 0.0
          %367 = vmatprep.subr.mxu0 0.0
          %368 = vmatpush1.msra.mxu0 0.0
          %369 = vmatprep.subr.mxu0 0.0
          %370 = vmatpush1.msra.mxu0 0.0
          %371 = vmatprep.subr.mxu0 0.0
          %372 = vmatpush1.msra.mxu0 0.0
          %373 = vmatprep.subr.mxu0 0.0
          %374 = vmatpush1.msra.mxu0 0.0
          %375 = vmatprep.subr.mxu0 0.0
          %376 = vmatpush1.msra.mxu0 0.0
          %377 = vmatprep.subr.mxu0 0.0
          %378 = vmatpush1.msra.mxu0 0.0
          %379 = vmatprep.subr.mxu0 0.0
          %380 = vmatpush1.msra.mxu0 0.0
          %381 = vmatprep.subr.mxu0 0.0
          %382 = vmatpush1.msra.mxu0 0.0
          %383 = vmatprep.subr.mxu0 0.0
          %384 = vmatpush1.msra.mxu0 0.0
          %385 = vmatprep.subr.mxu0 0.0
          %386 = vmatpush1.msra.mxu0 0.0
          %387 = vmatprep.subr.mxu0 0.0
          %388 = vmatpush1.msra.mxu0 0.0
          %389 = vmatprep.subr.mxu0 0.0
          %390 = vmatpush1.msra.mxu0 0.0
          %391 = vmatprep.subr.mxu0 0.0
          %392 = vmatpush1.msra.mxu0 0.0
          %393 = vmatprep.subr.mxu0 0.0
          %394 = vmatpush1.msra.mxu0 0.0
          %395 = vmatprep.subr.mxu0 0.0
          %396 = vmatpush1.msra.mxu0 0.0
          %397 = vmatprep.subr.mxu0 0.0
          %398 = vmatpush1.msra.mxu0 0.0
          %399 = vmatprep.subr.mxu0 0.0
          %400 = vmatpush1.msra.mxu0 0.0
          %401 = vmatprep.subr.mxu0 0.0
          %402 = vmatpush1.msra.mxu0 0.0
          %403 = vmatprep.subr.mxu0 0.0
          %404 = vmatpush1.msra.mxu0 0.0
          %405 = vmatprep.subr.mxu0 0.0
          %406 = vmatpush1.msra.mxu0 0.0
          %407 = vmatprep.subr.mxu0 0.0
          %408 = vmatpush1.msra.mxu0 0.0
          %409 = vmatprep.subr.mxu0 0.0
          %410 = vmatpush1.msra.mxu0 0.0
          %411 = vmatprep.subr.mxu0 0.0
          %412 = vmatpush1.msra.mxu0 0.0
          %413 = vmatprep.subr.mxu0 0.0
          %414 = vmatpush1.msra.mxu0 0.0
          %415 = vmatprep.subr.mxu0 0.0
          %416 = vmatpush1.msra.mxu0 0.0
          %417 = vmatprep.mubr.f32.mxu0 0.0
          %418 = vmatmul.mubr.f32.gmra.mrb[0].mxu0 %v347
          %v419 = vpop.f32.mrb[0].mxu0
          %v420 = vadd.f32 0.0, %v419
          %v421 = vpop.f32.mrb[0].mxu0
          %422 = vdwg.mxu0
          %v424 = vrot.slane %v420, 2
          %v426 = vadd.f32 %v420, %v424
          %v427 = vxor.u32 %v426, 2147483648
          %v428 = vmul.f32 %v427, 1.442695
          %v429 = vpow.pop %v428
          %v430 = vadd.f32 %v429, 1.0
          %v431 = vrcp.pop %v430
          %v432 = vmul.f32 1.0, %v431
          %433 = vst.msk [vmem:[#allocation6] sm:$0x3] %vm232, %v432
        $region44: #{tpu_custom_call.1} parent=31 // pred_fallthru
          _
        // Predicated region
        $region45: #{tpu_custom_call.1} parent=31 // pred_check
          %p434 = pneg %p118
        $region46: #{tpu_custom_call.1} parent=31 // pred_check_branch
          %436 = sbr.rel (%p434) target = $region48
        $region47: #{tpu_custom_call.1} parent=31 // pred_region
          %s438 = ssub.s32 32, 32
          %439 = vsyncadd [#allocation5], %s438
          %s440 = smul.addr %s22, 32
          %s441 = scalar_lea.hbm %s3, %s440
          %s443 = sshll.u32 [#allocation6], 4
          %s444 = int_to_ptr.vmem [resolvable:$true] %s443
          %446 = dma.vmem_to_hbm [thread:$0]  %s444, 32, %s441, [#allocation5]
        $region48: #{tpu_custom_call.1} parent=31 // pred_fallthru
          _
        // Predicated region
        $region49: #{tpu_custom_call.1} parent=31 // pred_check
          %p447 = pneg %p118
        $region50: #{tpu_custom_call.1} parent=31 // pred_check_branch
          %449 = sbr.rel (%p447) target = $region52
        $region51: #{tpu_custom_call.1} parent=31 // pred_region
          %450 = dma.done [#allocation5], 32
        $region52: #{tpu_custom_call.1} parent=31 // pred_fallthru
          _
      $region32: #{tpu_custom_call.1} parent=5 // pred_fallthru
        _
      %p451 = scmp.le.s32.totalorder 2, %s13
      // Predicated region
      $region53: #{tpu_custom_call.1} parent=5 // pred_check
        %p452 = pneg %p451
      $region54: #{tpu_custom_call.1} parent=5 // pred_check_branch
        %454 = sbr.rel (%p452) target = $region56
      $region55: #{tpu_custom_call.1} parent=5 // pred_region
        %s455 = ssub.s32 %s13, 2
      $region56: #{tpu_custom_call.1} parent=5 // pred_fallthru
        _
    $region6: #{tpu_custom_call.1} parent=1 // loop_footer
      %s17 = sadd.s32 1, %s13
    $region7: #{tpu_custom_call.1} parent=1 // loop_footer_branch
      %12 = sbr.rel target = $region3
    $region8: #{tpu_custom_call.1} parent=1 // loop_exit
      _
    %456 = vsyncpa [#allocation4], 1
    %s457 = scalar_lea.sflag [#allocation4], 1
    %458 = vsyncpa %s457, 1
    %459 = vsyncpa [#allocation5], 1
    %s460 = scalar_lea.sflag [#allocation5], 1
    %461 = vsyncpa %s460, 1

</llo_original>
